<compile_context>
chip_gen: v7x
topology: tpu7x:2x2x1
jax: 0.10.0
libtpu: 0.0.40
codegen_flags: <defaults>
</compile_context>

<pallas_src>
import numpy as np
import jax
import jax.numpy as jnp
from jax.experimental import pallas as pl
from jax.experimental.pallas import tpu as pltpu

KSIZE = 3
PAD = 1


def _make_conv_bn_relu_kernel(H, W, C_in, cout_tile, b_tile, act, use_mxu,
                              tap_chunk, mxu_precision):
    S = H * W
    # Static tap metadata: tap index t, flattened-spatial offset dy*W+dx.
    taps = []
    for ky in range(KSIZE):
        for kx in range(KSIZE):
            dy, dx = ky - PAD, kx - PAD
            taps.append((ky * KSIZE + kx, dy * W + dx))

    def kernel(x_ref, w_ref, off_ref, mask_ref, o_ref):
        # x_ref:    (b_tile, C_in, S)    flattened-spatial input slab
        # w_ref:    (cout_tile, 9*C_in)  BN scale pre-folded, col = tap*C_in + ic
        # off_ref:  (cout_tile, 1)       folded conv-bias + BN offset (f32)
        # mask_ref: (9, S)               host-precomputed 0/1 halo masks per tap
        # o_ref:    (b_tile, cout_tile, S)
        offset = off_ref[...]                         # (cout_tile, 1) f32

        def shifted_tap(x_b, t, off):
            if off == 0:
                return x_b                            # center tap: no shift/mask
            rolled = pltpu.roll(x_b, (-off) % S, axis=1)   # XLU lane roll
            return rolled * mask_ref[t:t + 1, :]      # zero the padding halo

        def per_image(b):
            x_b = x_ref[b]                            # (C_in, S)
            acc = None
            if use_mxu:
                # Fused taps: one (or few) K=tap_chunk*C_in matmuls per image.
                for c0 in range(0, KSIZE * KSIZE, tap_chunk):
                    chunk = taps[c0:c0 + tap_chunk]
                    stacked = jnp.concatenate(
                        [shifted_tap(x_b, t, off) for t, off in chunk], axis=0)
                    w_chunk = w_ref[:, c0 * C_in:(c0 + len(chunk)) * C_in]
                    part = jnp.dot(w_chunk, stacked,
                                   preferred_element_type=jnp.float32,
                                   precision=mxu_precision)
                    acc = part if acc is None else acc + part
            else:
                # Tiny-channel path: exact f32 VPU broadcast-FMAs.
                w_all = w_ref[...].astype(jnp.float32)
                for t, off in taps:
                    sh = shifted_tap(x_b, t, off).astype(jnp.float32)
                    for ic in range(C_in):
                        col = t * C_in + ic
                        contrib = w_all[:, col:col + 1] * sh[ic:ic + 1, :]
                        acc = contrib if acc is None else acc + contrib
            y = acc + offset                          # folded conv-bias + BN offset
            if act:
                y = jnp.maximum(y, 0.0)               # ReLU
            o_ref[b] = y.astype(o_ref.dtype)

        if b_tile == 1:
            per_image(0)
        elif b_tile <= 2 or cout_tile * S * 4 <= 32 * 1024:
            # Tiny per-image working set: a short static unroll is fine.
            for b in range(b_tile):
                per_image(b)
        else:
            # Bound vreg live ranges: pipeline one image at a time.
            @pl.loop(0, b_tile)
            def _(b):
                per_image(b)

    return kernel


def conv2d_bn_relu(x, weight, bias, bn_gamma, bn_beta, bn_mean, bn_var,
                   *, eps=1e-5, act=True, mxu_bf16=False):
    """Forward of the PyTorch Conv2D block. x: (N,C_in,H,W) -> (N,C_out,H,W)."""
    N, C_in, H, W = x.shape
    C_out = weight.shape[0]
    S = H * W
    out_dtype = x.dtype

    # ---- fold conv bias + BatchNorm(eval) into weights / per-channel offset ----
    scale = bn_gamma / jnp.sqrt(bn_var + eps)                          # (C_out,)
    offset = ((bias - bn_mean) * scale + bn_beta).astype(jnp.float32)
    offset = offset.reshape(C_out, 1)

    # Tap-major weight layout with BN scale folded in: col = (ky*3+kx)*C_in + ic.
    w_packed = jnp.transpose(weight, (0, 2, 3, 1)).reshape(C_out, KSIZE * KSIZE * C_in)
    w_packed = w_packed * scale[:, None]

    # ---- MXU-vs-VPU path and compute dtype ----
    use_mxu = (KSIZE * KSIZE * C_in >= 32 and C_out >= 8)
    if use_mxu and mxu_bf16:
        compute_dtype = jnp.bfloat16                 # bf16-native MXU fast path
        mxu_precision = jax.lax.Precision.DEFAULT
    else:
        compute_dtype = x.dtype
        mxu_precision = (jax.lax.Precision.HIGHEST
                         if compute_dtype == jnp.float32
                         else jax.lax.Precision.DEFAULT)

    # Flatten spatial dims to one lane-dense axis (metadata-only reshape).
    x_flat = x.reshape(N, C_in, S).astype(compute_dtype)
    w_packed = w_packed.astype(compute_dtype)

    # ---- host-precomputed zero-padding halo masks, one row per tap ----
    pos = np.arange(S)
    row, col = pos // W, pos % W
    mask_rows = []
    for ky in range(KSIZE):
        for kx in range(KSIZE):
            dy, dx = ky - PAD, kx - PAD
            mask_rows.append(((row + dy >= 0) & (row + dy < H)
                              & (col + dx >= 0) & (col + dx < W)))
    masks = jnp.asarray(np.stack(mask_rows, 0).astype(np.float32)).astype(compute_dtype)

    # ---- output-channel tiling (second "parallel" grid axis) ----
    cout_tile = C_out
    if C_out > 256:
        for cand in (256, 128, 64, 32, 16, 8):
            if C_out % cand == 0:
                cout_tile = cand
                break

    # ---- tap chunking bounds the stacked (tap_chunk*C_in, S) slab footprint ----
    in_bytes = jnp.dtype(compute_dtype).itemsize
    out_bytes = jnp.dtype(out_dtype).itemsize
    tap_chunk = 9 if KSIZE * KSIZE * C_in * S * in_bytes <= (2 << 20) else 3

    # ---- VMEM-budget-aware batch tile; keep >= min(N,4) grid steps so the
    #      pipeline double-buffers and v7x can shard the "parallel" axes ----
    try:
        vmem_cap = pltpu.get_tpu_info().vmem_capacity_bytes
    except Exception:
        vmem_cap = 64 * 1024 * 1024                  # v7x per-core VMEM (smallest)
    budget = int(vmem_cap * 0.55)

    def per_step_vmem(bt):
        blocks = (bt * C_in * S * in_bytes                   # input block
                  + bt * cout_tile * S * out_bytes           # output block
                  + cout_tile * KSIZE * KSIZE * C_in * in_bytes
                  + cout_tile * 4
                  + KSIZE * KSIZE * S * in_bytes)            # masks
        working = tap_chunk * C_in * S * in_bytes + cout_tile * S * 4
        return 2 * blocks + working                          # double-buffered blocks

    target_steps = min(N, 4)
    b_tile = 1
    for cand in range(min(N, 8), 0, -1):
        if (N % cand == 0 and (N // cand) >= target_steps
                and per_step_vmem(cand) <= budget):
            b_tile = cand
            break

    vmem_limit = int(min(max(per_step_vmem(b_tile) * 3 // 2 + (4 << 20), 32 << 20),
                         int(vmem_cap * 0.75)))

    kernel = _make_conv_bn_relu_kernel(H, W, C_in, cout_tile, b_tile, act,
                                       use_mxu, tap_chunk, mxu_precision)

    # TODO(synk): for very large H*W or C_in, add a row-blocked spatial axis
    # (with +/-1-row halos for the roll-by-W taps) and a C_in-chunked reduction
    # axis ("arbitrary" + VMEM accumulator); current tiling is batch x C_out only.
    out_flat = pl.pallas_call(
        kernel,
        out_shape=jax.ShapeDtypeStruct((N, C_out, S), out_dtype),
        grid_spec=pltpu.PrefetchScalarGridSpec(
            num_scalar_prefetch=0,
            grid=(N // b_tile, C_out // cout_tile),
            in_specs=[
                pl.BlockSpec((b_tile, C_in, S), lambda i, j: (i, 0, 0)),
                pl.BlockSpec((cout_tile, KSIZE * KSIZE * C_in), lambda i, j: (j, 0)),
                pl.BlockSpec((cout_tile, 1), lambda i, j: (j, 0)),
                pl.BlockSpec((KSIZE * KSIZE, S), lambda i, j: (0, 0)),
            ],
            out_specs=pl.BlockSpec((b_tile, cout_tile, S), lambda i, j: (i, j, 0)),
        ),
        compiler_params=pltpu.CompilerParams(
            dimension_semantics=("parallel", "parallel"),
            vmem_limit_bytes=vmem_limit,
        ),
    )(x_flat, w_packed, offset, masks)

    return out_flat.reshape(N, C_out, H, W)


def reference(x, weight, bias, bn_gamma, bn_beta, bn_mean, bn_var,
              *, eps=1e-5, act=True):
    """Pure-JAX reference of the PyTorch forward (conv -> BN(eval) -> ReLU)."""
    y = jax.lax.conv_general_dilated(
        x, weight, window_strides=(1, 1), padding=((PAD, PAD), (PAD, PAD)),
        dimension_numbers=("NCHW", "OIHW", "NCHW"),
        precision=jax.lax.Precision.HIGHEST)
    y = y + bias.reshape(1, -1, 1, 1)
    inv = (bn_gamma / jnp.sqrt(bn_var + eps)).reshape(1, -1, 1, 1)
    y = (y - bn_mean.reshape(1, -1, 1, 1)) * inv + bn_beta.reshape(1, -1, 1, 1)
    if act:
        y = jnp.maximum(y, 0.0)
    return y


if __name__ == "__main__":
    key = jax.random.PRNGKey(0)
    ks = jax.random.split(key, 7)

    N, C_in, C_out, H, W = 2, 4, 8, 16, 16
    x = jax.random.normal(ks[0], (N, C_in, H, W), dtype=jnp.float32)

    # Conv2d(C_in, C_out, 3, padding=1, bias=True) init-style parameters.
    fan_in = C_in * KSIZE * KSIZE
    bound = 1.0 / (fan_in ** 0.5)
    weight = jax.random.uniform(ks[1], (C_out, C_in, KSIZE, KSIZE),
                                minval=-bound, maxval=bound, dtype=jnp.float32)
    bias = jax.random.uniform(ks[2], (C_out,), minval=-bound, maxval=bound,
                              dtype=jnp.float32)

    # BatchNorm2d(C_out) parameters / running stats (inference mode).
    bn_gamma = jax.random.uniform(ks[3], (C_out,), minval=0.5, maxval=1.5,
                                  dtype=jnp.float32)
    bn_beta = 0.1 * jax.random.normal(ks[4], (C_out,), dtype=jnp.float32)
    bn_mean = 0.1 * jax.random.normal(ks[5], (C_out,), dtype=jnp.float32)
    bn_var = jax.random.uniform(ks[6], (C_out,), minval=0.5, maxval=1.5,
                                dtype=jnp.float32)

    out = conv2d_bn_relu(x, weight, bias, bn_gamma, bn_beta, bn_mean, bn_var)
    out = jax.block_until_ready(out)

    ref = jax.block_until_ready(
        reference(x, weight, bias, bn_gamma, bn_beta, bn_mean, bn_var))

    assert out.shape == (N, C_out, H, W)
    max_err = float(jnp.max(jnp.abs(out - ref)))
    assert jnp.allclose(out, ref, atol=1e-4, rtol=1e-4), f"max abs err {max_err}"

    print("KERNEL_OK")
</pallas_src>

<mosaic_0001>
module attributes {stable_mosaic.version = 11 : i64} {
  func.func @kernel(%arg0: i32, %arg1: i32, %arg2: memref<1x4x256xf32, #tpu.memory_space<vmem>>, %arg3: memref<8x36xf32, #tpu.memory_space<vmem>>, %arg4: memref<8x1xf32, #tpu.memory_space<vmem>>, %arg5: memref<9x256xf32, #tpu.memory_space<vmem>>, %arg6: memref<1x8x256xf32, #tpu.memory_space<vmem>>) attributes {dimension_semantics = [#tpu.dimension_semantics<parallel>, #tpu.dimension_semantics<parallel>], iteration_bounds = array<i64: 2, 1>, scalar_prefetch = 0 : i64, scratch_operands = 0 : i64, tpu.core_type = #tpu.core_type<tc>, window_params = [{transform_indices = @transform_0, window_bounds = array<i64: 1, 4, 256>}, {transform_indices = @transform_1, window_bounds = array<i64: 8, 36>}, {transform_indices = @transform_2, window_bounds = array<i64: 8, 1>}, {pipeline_mode = #tpu.pipeline_mode<synchronous>, transform_indices = @transform_3, window_bounds = array<i64: 9, 256>}, {transform_indices = @transform_4, window_bounds = array<i64: 1, 8, 256>}]} {
    %c0 = arith.constant 0 : index
    %c0_0 = arith.constant 0 : index
    %0 = vector.load %arg4[%c0, %c0_0] : memref<8x1xf32, #tpu.memory_space<vmem>>, vector<8x1xf32>
    %c0_1 = arith.constant 0 : index
    %c0_2 = arith.constant 0 : index
    %c0_3 = arith.constant 0 : index
    %1 = vector.load %arg2[%c0_1, %c0_2, %c0_3] : memref<1x4x256xf32, #tpu.memory_space<vmem>>, vector<1x4x256xf32>
    %2 = vector.shape_cast %1 : vector<1x4x256xf32> to vector<4x256xf32>
    %c17_i32 = arith.constant 17 : i32
    %3 = tpu.dynamic_rotate %2 by %c17_i32 dim 1 : vector<4x256xf32>, i32 -> vector<4x256xf32>
    %c0_4 = arith.constant 0 : index
    %c0_5 = arith.constant 0 : index
    %4 = vector.load %arg5[%c0_4, %c0_5] : memref<9x256xf32, #tpu.memory_space<vmem>>, vector<1x256xf32>
    %5 = vector.broadcast %4 : vector<1x256xf32> to vector<4x256xf32>
    %6 = arith.mulf %3, %5 : vector<4x256xf32>
    %c16_i32 = arith.constant 16 : i32
    %7 = tpu.dynamic_rotate %2 by %c16_i32 dim 1 : vector<4x256xf32>, i32 -> vector<4x256xf32>
    %c1 = arith.constant 1 : index
    %c0_6 = arith.constant 0 : index
    %8 = vector.load %arg5[%c1, %c0_6] : memref<9x256xf32, #tpu.memory_space<vmem>>, vector<1x256xf32>
    %9 = vector.broadcast %8 : vector<1x256xf32> to vector<4x256xf32>
    %10 = arith.mulf %7, %9 : vector<4x256xf32>
    %c15_i32 = arith.constant 15 : i32
    %11 = tpu.dynamic_rotate %2 by %c15_i32 dim 1 : vector<4x256xf32>, i32 -> vector<4x256xf32>
    %c2 = arith.constant 2 : index
    %c0_7 = arith.constant 0 : index
    %12 = vector.load %arg5[%c2, %c0_7] : memref<9x256xf32, #tpu.memory_space<vmem>>, vector<1x256xf32>
    %13 = vector.broadcast %12 : vector<1x256xf32> to vector<4x256xf32>
    %14 = arith.mulf %11, %13 : vector<4x256xf32>
    %c1_i32 = arith.constant 1 : i32
    %15 = tpu.dynamic_rotate %2 by %c1_i32 dim 1 : vector<4x256xf32>, i32 -> vector<4x256xf32>
    %c3 = arith.constant 3 : index
    %c0_8 = arith.constant 0 : index
    %16 = vector.load %arg5[%c3, %c0_8] : memref<9x256xf32, #tpu.memory_space<vmem>>, vector<1x256xf32>
    %17 = vector.broadcast %16 : vector<1x256xf32> to vector<4x256xf32>
    %18 = arith.mulf %15, %17 : vector<4x256xf32>
    %c255_i32 = arith.constant 255 : i32
    %19 = tpu.dynamic_rotate %2 by %c255_i32 dim 1 : vector<4x256xf32>, i32 -> vector<4x256xf32>
    %c5 = arith.constant 5 : index
    %c0_9 = arith.constant 0 : index
    %20 = vector.load %arg5[%c5, %c0_9] : memref<9x256xf32, #tpu.memory_space<vmem>>, vector<1x256xf32>
    %21 = vector.broadcast %20 : vector<1x256xf32> to vector<4x256xf32>
    %22 = arith.mulf %19, %21 : vector<4x256xf32>
    %c241_i32 = arith.constant 241 : i32
    %23 = tpu.dynamic_rotate %2 by %c241_i32 dim 1 : vector<4x256xf32>, i32 -> vector<4x256xf32>
    %c6 = arith.constant 6 : index
    %c0_10 = arith.constant 0 : index
    %24 = vector.load %arg5[%c6, %c0_10] : memref<9x256xf32, #tpu.memory_space<vmem>>, vector<1x256xf32>
    %25 = vector.broadcast %24 : vector<1x256xf32> to vector<4x256xf32>
    %26 = arith.mulf %23, %25 : vector<4x256xf32>
    %c240_i32 = arith.constant 240 : i32
    %27 = tpu.dynamic_rotate %2 by %c240_i32 dim 1 : vector<4x256xf32>, i32 -> vector<4x256xf32>
    %c7 = arith.constant 7 : index
    %c0_11 = arith.constant 0 : index
    %28 = vector.load %arg5[%c7, %c0_11] : memref<9x256xf32, #tpu.memory_space<vmem>>, vector<1x256xf32>
    %29 = vector.broadcast %28 : vector<1x256xf32> to vector<4x256xf32>
    %30 = arith.mulf %27, %29 : vector<4x256xf32>
    %c239_i32 = arith.constant 239 : i32
    %31 = tpu.dynamic_rotate %2 by %c239_i32 dim 1 : vector<4x256xf32>, i32 -> vector<4x256xf32>
    %c8 = arith.constant 8 : index
    %c0_12 = arith.constant 0 : index
    %32 = vector.load %arg5[%c8, %c0_12] : memref<9x256xf32, #tpu.memory_space<vmem>>, vector<1x256xf32>
    %33 = vector.broadcast %32 : vector<1x256xf32> to vector<4x256xf32>
    %34 = arith.mulf %31, %33 : vector<4x256xf32>
    %35 = tpu.concatenate %6, %10, %14, %18, %2, %22, %26, %30, %34 in 0 : vector<4x256xf32>, vector<4x256xf32>, vector<4x256xf32>, vector<4x256xf32>, vector<4x256xf32>, vector<4x256xf32>, vector<4x256xf32>, vector<4x256xf32>, vector<4x256xf32> -> vector<36x256xf32>
    %c0_13 = arith.constant 0 : index
    %c0_14 = arith.constant 0 : index
    %36 = vector.load %arg3[%c0_13, %c0_14] : memref<8x36xf32, #tpu.memory_space<vmem>>, vector<8x36xf32>
    %cst = arith.constant dense<0.000000e+00> : vector<8x256xf32>
    %37 = tpu.matmul %36, %35, %cst {dimension_numbers = #tpu.dot_dimension_numbers<[1], [0], [0], [1], [0, 0, 1, 1], [], []>, precision = #tpu.contract_precision<fp32>} : vector<8x36xf32>, vector<36x256xf32>, vector<8x256xf32> -> vector<8x256xf32>
    %38 = vector.broadcast %0 : vector<8x1xf32> to vector<8x256xf32>
    %39 = arith.addf %37, %38 : vector<8x256xf32>
    %cst_15 = arith.constant 0.000000e+00 : f32
    %40 = vector.broadcast %cst_15 : f32 to vector<8x256xf32>
    %41 = arith.maximumf %39, %40 : vector<8x256xf32>
    %c0_16 = arith.constant 0 : index
    %c0_17 = arith.constant 0 : index
    %c0_18 = arith.constant 0 : index
    %42 = vector.load %arg6[%c0_16, %c0_17, %c0_18] : memref<1x8x256xf32, #tpu.memory_space<vmem>>, vector<1x8x256xf32>
    %43 = vector.shape_cast %42 : vector<1x8x256xf32> to vector<8x256xf32>
    %44 = vector.shape_cast %41 : vector<8x256xf32> to vector<1x8x256xf32>
    tpu.vector_store %arg6[%c0_16, %c0_17, %c0_18], %44 {strides = array<i32>} : memref<1x8x256xf32, #tpu.memory_space<vmem>>, vector<1x8x256xf32>,
    return
  }
  func.func @transform_0(%arg0: i32, %arg1: i32) -> (i32, i32, i32) {
    %c0_i32 = arith.constant 0 : i32
    %c0_i32_0 = arith.constant 0 : i32
    %c0_i32_1 = arith.constant 0 : i32
    return %arg0, %c0_i32, %c0_i32_0 : i32, i32, i32
  }
  func.func @transform_1(%arg0: i32, %arg1: i32) -> (i32, i32) {
    %c0_i32 = arith.constant 0 : i32
    %c0_i32_0 = arith.constant 0 : i32
    return %arg1, %c0_i32 : i32, i32
  }
  func.func @transform_2(%arg0: i32, %arg1: i32) -> (i32, i32) {
    %c0_i32 = arith.constant 0 : i32
    %c0_i32_0 = arith.constant 0 : i32
    return %arg1, %c0_i32 : i32, i32
  }
  func.func @transform_3(%arg0: i32, %arg1: i32) -> (i32, i32) {
    %c0_i32 = arith.constant 0 : i32
    %c0_i32_0 = arith.constant 0 : i32
    %c0_i32_1 = arith.constant 0 : i32
    return %c0_i32, %c0_i32_0 : i32, i32
  }
  func.func @transform_4(%arg0: i32, %arg1: i32) -> (i32, i32, i32) {
    %c0_i32 = arith.constant 0 : i32
    %c0_i32_0 = arith.constant 0 : i32
    return %arg0, %arg1, %c0_i32 : i32, i32, i32
  }
}

</mosaic_0001>

<llo_original>
// kernel: tpu_custom_call.1
$region0: #{tpu_custom_call.1}
  #allocation0 [shape = 'u32[]', space=smem, size = 0x4, offset = 0x4, fixed_abs, tag = 'smem constant byte address 0x4 - core index']
  #allocation1 [shape = 'u32[144,128]{1,0:T(1,128)}', space=vmem, size = 0x12000, scoped, tag = 'internal scratch']
  %s0 = inlined_call_operand.hbm [shape: f32[2,4,256], index: 0, kind: input, shape index: {}]
  %s1 = inlined_call_operand.vmem [shape: f32[8,36], index: 1, kind: input, shape index: {}]
  %s2 = inlined_call_operand.vmem [shape: f32[8,1], index: 2, kind: input, shape index: {}]
  %s3 = inlined_call_operand.hbm [shape: f32[9,256], index: 3, kind: input, shape index: {}]
  %s4 = inlined_call_operand.hbm [shape: f32[2,8,256], index: 4, kind: output, shape index: {}]
  %s5 = sld [smem:[#allocation0]]
  $region57: #{tpu_custom_call.1} parent=0
    _
  %s7 = ssub.s32 1, %s5
  %s8 = scalar_select 0, %s7, %s5
  $region1: #{tpu_custom_call.1} parent=0
    #allocation2 [shape = 'u8[8192]{0}', space=vmem, size = 0x2000, scoped, tag = 'input window, operand 0']
    #allocation3 [shape = 's32[2]{0}', space=sflag, size = 0x8, scoped, tag = 'scoped memory for tpu_custom_call.1']
    #allocation4 [shape = 's32[2]{0}', space=sflag, size = 0x8, scoped, tag = 'scoped memory for tpu_custom_call.1']
    #allocation5 [shape = 'u8[16384]{0}', space=vmem, size = 0x4000, scoped, tag = 'input window, operand 3, single buffered']
    #allocation6 [shape = 's32[1]{0}', space=sflag, size = 0x4, scoped, tag = 'scoped memory for tpu_custom_call.1']
    #allocation7 [shape = 'u8[16384]{0}', space=vmem, size = 0x4000, scoped, tag = 'output window, operand 0']
    %9 = vsyncpa [#allocation3], 0
    %s10 = scalar_lea.sflag [#allocation3], 1
    %11 = vsyncpa %s10, 0
    %12 = vsyncpa [#allocation6], 0
    %13 = vsyncpa [#allocation4], 0
    %s14 = scalar_lea.sflag [#allocation4], 1
    %15 = vsyncpa %s14, 0
    loop: start=0, step=1, limit=4
    $region2: #{tpu_custom_call.1} parent=1 // loop_pre_header
      _
    $region3: #{tpu_custom_call.1} parent=1 // loop_header
      %s17 = sphi 0, %s21
      %p18 = scmp.ge.s32.totalorder %s17, 4
      %s24 = sphi 0, %s36
      %s25 = sphi 0, %s32
      %s26 = sphi 0, %s24
      %s27 = sphi 0, %s25
      %s28 = sphi 0, %s26
      %s29 = sphi 0, %s27
      %s39 = sphi 0, %s41
      %s42 = sphi 0, %s39
      %s43 = sphi 0, %s42
      %s59 = sphi 0, %s43
      %s65 = sphi 0, %s67
      %s68 = sphi 0, %s65
      %s69 = sphi 0, %s68
      %s85 = sphi 0, %s69
      %s91 = sphi 0, %s93
      %s94 = sphi 0, %s91
      %s95 = sphi 0, %s94
      %s111 = sphi 0, %s95
      %s115 = sphi 0, %s115
      %s117 = sphi 0, %s115
      %s118 = sphi 0, %s117
      %s132 = sphi 0, %s118
      %s140 = sphi 0, %s142
      %s143 = sphi 0, %s140
      %s144 = sphi 0, %s143
      %s160 = sphi 0, %s144
    $region4: #{tpu_custom_call.1} parent=1 // loop_header_branch
      %20 = sbr.rel (%p18) target = $region8
    $region5: #{tpu_custom_call.1} parent=1 // loop_body
      %s22 = ssub.s32 %s17, 1
      %s23 = ssub.s32 %s17, 2
      %s30 = sadd.s32 1, %s25
      %p31 = scmp.ge.s32.totalorder %s30, 1
      %s32 = scalar_select %p31, 0, %s30
      %s33 = sadd.s32 1, %s24
      %s34 = scalar_select %p31, %s33, %s24
      %p35 = scmp.ge.s32.totalorder %s34, 2
      %s36 = scalar_select %p35, 0, %s34
      %s37 = ssub.s32 %s24, %s36
      %p38 = scmp.eq.s32.totalorder %s37, 0
      %s40 = sadd.s32 %s39, 1
      %s41 = scalar_select %p38, %s39, %s40
      %p44 = pneg %p38
      %p45 = scmp.eq.s32.totalorder %s17, 1
      %p46 = por %p44, %p45
      %p47 = scmp.ne.s32.totalorder %s39, %s42
      %p48 = scmp.eq.s32.totalorder %s17, 0
      %p49 = por %p47, %p48
      %p50 = scmp.ne.s32.totalorder %s39, %s42
      %p51 = scmp.eq.s32.totalorder %s22, 1
      %p52 = por %p50, %p51
      %p53 = scmp.ne.s32.totalorder %s42, %s43
      %p54 = scmp.eq.s32.totalorder %s22, 0
      %p55 = por %p53, %p54
      %p56 = scmp.ne.s32.totalorder %s42, %s43
      %p57 = scmp.eq.s32.totalorder %s23, 1
      %p58 = por %p56, %p57
      %p60 = scmp.ne.s32.totalorder %s43, %s59
      %p61 = scmp.eq.s32.totalorder %s23, 0
      %p62 = por %p60, %p61
      %s63 = ssub.s32 %s25, %s32
      %p64 = scmp.eq.s32.totalorder %s63, 0
      %s66 = sadd.s32 %s65, 1
      %s67 = scalar_select %p64, %s65, %s66
      %p70 = pneg %p64
      %p71 = scmp.eq.s32.totalorder %s17, 1
      %p72 = por %p70, %p71
      %p73 = scmp.ne.s32.totalorder %s65, %s68
      %p74 = scmp.eq.s32.totalorder %s17, 0
      %p75 = por %p73, %p74
      %p76 = scmp.ne.s32.totalorder %s65, %s68
      %p77 = scmp.eq.s32.totalorder %s22, 1
      %p78 = por %p76, %p77
      %p79 = scmp.ne.s32.totalorder %s68, %s69
      %p80 = scmp.eq.s32.totalorder %s22, 0
      %p81 = por %p79, %p80
      %p82 = scmp.ne.s32.totalorder %s68, %s69
      %p83 = scmp.eq.s32.totalorder %s23, 1
      %p84 = por %p82, %p83
      %p86 = scmp.ne.s32.totalorder %s69, %s85
      %p87 = scmp.eq.s32.totalorder %s23, 0
      %p88 = por %p86, %p87
      %s89 = ssub.s32 %s25, %s32
      %p90 = scmp.eq.s32.totalorder %s89, 0
      %s92 = sadd.s32 %s91, 1
      %s93 = scalar_select %p90, %s91, %s92
      %p96 = pneg %p90
      %p97 = scmp.eq.s32.totalorder %s17, 1
      %p98 = por %p96, %p97
      %p99 = scmp.ne.s32.totalorder %s91, %s94
      %p100 = scmp.eq.s32.totalorder %s17, 0
      %p101 = por %p99, %p100
      %p102 = scmp.ne.s32.totalorder %s91, %s94
      %p103 = scmp.eq.s32.totalorder %s22, 1
      %p104 = por %p102, %p103
      %p105 = scmp.ne.s32.totalorder %s94, %s95
      %p106 = scmp.eq.s32.totalorder %s22, 0
      %p107 = por %p105, %p106
      %p108 = scmp.ne.s32.totalorder %s94, %s95
      %p109 = scmp.eq.s32.totalorder %s23, 1
      %p110 = por %p108, %p109
      %p112 = scmp.ne.s32.totalorder %s95, %s111
      %p113 = scmp.eq.s32.totalorder %s23, 0
      %p114 = por %p112, %p113
      %s116 = sadd.s32 %s115, 1
      %p119 = scmp.eq.s32.totalorder %s17, 1
      %p120 = scmp.ne.s32.totalorder %s115, %s117
      %p121 = scmp.eq.s32.totalorder %s17, 0
      %p122 = por %p120, %p121
      %p123 = scmp.ne.s32.totalorder %s115, %s117
      %p124 = scmp.eq.s32.totalorder %s22, 1
      %p125 = por %p123, %p124
      %p126 = scmp.ne.s32.totalorder %s117, %s118
      %p127 = scmp.eq.s32.totalorder %s22, 0
      %p128 = por %p126, %p127
      %p129 = scmp.ne.s32.totalorder %s117, %s118
      %p130 = scmp.eq.s32.totalorder %s23, 1
      %p131 = por %p129, %p130
      %p133 = scmp.ne.s32.totalorder %s118, %s132
      %p134 = scmp.eq.s32.totalorder %s23, 0
      %p135 = por %p133, %p134
      %s136 = ssub.s32 %s24, %s36
      %s137 = ssub.s32 %s25, %s32
      %s138 = sor.u32 %s136, %s137
      %p139 = scmp.eq.s32.totalorder %s138, 0
      %s141 = sadd.s32 %s140, 1
      %s142 = scalar_select %p139, %s140, %s141
      %p145 = pneg %p139
      %p146 = scmp.eq.s32.totalorder %s17, 1
      %p147 = por %p145, %p146
      %p148 = scmp.ne.s32.totalorder %s140, %s143
      %p149 = scmp.eq.s32.totalorder %s17, 0
      %p150 = por %p148, %p149
      %p151 = scmp.ne.s32.totalorder %s140, %s143
      %p152 = scmp.eq.s32.totalorder %s22, 1
      %p153 = por %p151, %p152
      %p154 = scmp.ne.s32.totalorder %s143, %s144
      %p155 = scmp.eq.s32.totalorder %s22, 0
      %p156 = por %p154, %p155
      %p157 = scmp.ne.s32.totalorder %s143, %s144
      %p158 = scmp.eq.s32.totalorder %s23, 1
      %p159 = por %p157, %p158
      %p161 = scmp.ne.s32.totalorder %s144, %s160
      %p162 = scmp.eq.s32.totalorder %s23, 0
      %p163 = por %p161, %p162
      %p164 = scmp.le.s32.totalorder 1, %s17
      %p165 = scmp.lt.s32.totalorder %s17, 3
      %p166 = pnand %p164, %p165
      %p167 = pneg %p166
      // Predicated region
      $region9: #{tpu_custom_call.1} parent=5 // pred_check
        _
      $region10: #{tpu_custom_call.1} parent=5 // pred_check_branch
        %169 = sbr.rel (%p166) target = $region12
      $region11: #{tpu_custom_call.1} parent=5 // pred_region
        %s170 = ssub.s32 %s17, 1
        // Predicated region
        $region13: #{tpu_custom_call.1} parent=11 // pred_check
          %p171 = pneg %p81
        $region14: #{tpu_custom_call.1} parent=11 // pred_check_branch
          %173 = sbr.rel (%p171) target = $region16
        $region15: #{tpu_custom_call.1} parent=11 // pred_region
          %p174 = scmp.lt.s32.totalorder %s27, 0
          %s175 = scalar_select %p174, %s27, 0
          %s176 = smul.addr %s175, 8
          %s177 = scalar_lea.vmem %s1, %s176
        $region16: #{tpu_custom_call.1} parent=11 // pred_fallthru
          _
        // Predicated region
        $region17: #{tpu_custom_call.1} parent=11 // pred_check
          %p178 = pneg %p107
        $region18: #{tpu_custom_call.1} parent=11 // pred_check_branch
          %180 = sbr.rel (%p178) target = $region20
        $region19: #{tpu_custom_call.1} parent=11 // pred_region
          %p181 = scmp.lt.s32.totalorder %s27, 0
          %s182 = scalar_select %p181, %s27, 0
          %s183 = smul.addr %s182, 8
          %s184 = scalar_lea.vmem %s2, %s183
        $region20: #{tpu_custom_call.1} parent=11 // pred_fallthru
          _
        // Predicated region
        $region21: #{tpu_custom_call.1} parent=11 // pred_check
          %p185 = pneg %p128
        $region22: #{tpu_custom_call.1} parent=11 // pred_check_branch
          %187 = sbr.rel (%p185) target = $region24
        $region23: #{tpu_custom_call.1} parent=11 // pred_region
          %s189 = ssub.s32 512, 512
          %190 = vsyncadd [#allocation6], %s189
          %s191 = sshll.u32 [#allocation5], 4
          %s192 = int_to_ptr.vmem [resolvable:$true] %s191
          %197 = dma.hbm_to_vmem [thread:$0]  %s3, 512, %s192, [#allocation6], 256, 256, 16
        $region24: #{tpu_custom_call.1} parent=11 // pred_fallthru
          _
      $region12: #{tpu_custom_call.1} parent=5 // pred_fallthru
        _
      %p198 = scmp.lt.s32.totalorder %s17, 2
      // Predicated region
      $region25: #{tpu_custom_call.1} parent=5 // pred_check
        %p199 = pneg %p198
      $region26: #{tpu_custom_call.1} parent=5 // pred_check_branch
        %201 = sbr.rel (%p199) target = $region28
      $region27: #{tpu_custom_call.1} parent=5 // pred_region
        // Predicated region
        $region29: #{tpu_custom_call.1} parent=27 // pred_check
          %p202 = pneg %p49
        $region30: #{tpu_custom_call.1} parent=27 // pred_check_branch
          %204 = sbr.rel (%p202) target = $region32
        $region31: #{tpu_custom_call.1} parent=27 // pred_region
          %s205 = sand.u32 %s39, 1
          %s206 = scalar_lea.sflag [#allocation3], %s205
          %s207 = sand.u32 %s39, 1
          %s208 = smul.addr %s207, 8
          %s209 = scalar_lea.vmem [#allocation2], %s208
          %s211 = ssub.s32 128, 128
          %212 = vsyncadd %s206, %s211
          %s213 = smul.addr %s24, 2
          %s214 = smul.addr %s213, 64
          %s215 = scalar_lea.hbm %s0, %s214
          %s217 = sshll.u32 %s209, 4
          %s218 = int_to_ptr.vmem [resolvable:$true] %s217
          %220 = dma.hbm_to_vmem [thread:$0]  %s215, 128, %s218, %s206
        $region32: #{tpu_custom_call.1} parent=27 // pred_fallthru
          _
      $region28: #{tpu_custom_call.1} parent=5 // pred_fallthru
        _
      %p221 = scmp.le.s32.totalorder 1, %s17
      %p222 = scmp.lt.s32.totalorder %s17, 3
      %p223 = pnand %p221, %p222
      %p224 = pneg %p223
      // Predicated region
      $region33: #{tpu_custom_call.1} parent=5 // pred_check
        _
      $region34: #{tpu_custom_call.1} parent=5 // pred_check_branch
        %226 = sbr.rel (%p223) target = $region36
      $region35: #{tpu_custom_call.1} parent=5 // pred_region
        %s227 = ssub.s32 %s17, 1
        %s228 = sand.u32 %s42, 1
        %s229 = scalar_lea.sflag [#allocation3], %s228
        %s230 = sand.u32 %s42, 1
        %s231 = smul.addr %s230, 8
        %s232 = scalar_lea.vmem [#allocation2], %s231
        // Predicated region
        $region37: #{tpu_custom_call.1} parent=35 // pred_check
          %p233 = pneg %p55
        $region38: #{tpu_custom_call.1} parent=35 // pred_check_branch
          %235 = sbr.rel (%p233) target = $region40
        $region39: #{tpu_custom_call.1} parent=35 // pred_region
          %236 = dma.done %s229, 128
        $region40: #{tpu_custom_call.1} parent=35 // pred_fallthru
          _
        // Predicated region
        $region41: #{tpu_custom_call.1} parent=35 // pred_check
          %p237 = pneg %p128
        $region42: #{tpu_custom_call.1} parent=35 // pred_check_branch
          %239 = sbr.rel (%p237) target = $region44
        $region43: #{tpu_custom_call.1} parent=35 // pred_region
          %240 = dma.done [#allocation6], 512
        $region44: #{tpu_custom_call.1} parent=35 // pred_fallthru
          _
        %s241 = sand.u32 %s42, 1
        %s242 = scalar_lea.sflag [#allocation3], %s241
        %s243 = sand.u32 %s42, 1
        %s244 = smul.addr %s243, 8
        %s245 = scalar_lea.vmem [#allocation2], %s244
        %p246 = pneg %p55
        %p247 = pneg %p52
        %p248 = scmp.lt.s32.totalorder %s27, 0
        %s249 = scalar_select %p248, %s27, 0
        %s250 = smul.addr %s249, 8
        %s251 = scalar_lea.vmem %s1, %s250
        %p252 = pneg %p81
        %p253 = pneg %p78
        %p254 = scmp.lt.s32.totalorder %s27, 0
        %s255 = scalar_select %p254, %s27, 0
        %s256 = smul.addr %s255, 8
        %s257 = scalar_lea.vmem %s2, %s256
        %p258 = pneg %p107
        %p259 = pneg %p104
        %p260 = pneg %p128
        %p261 = pneg %p125
        %p262 = pneg %p156
        %p263 = pneg %p153
        %s264 = sand.u32 %s143, 1
        %s265 = scalar_lea.sflag [#allocation4], %s264
        %s266 = sand.u32 %s143, 1
        %s267 = smul.addr %s266, 16
        %s268 = scalar_lea.vmem [#allocation7], %s267
        %p269 = scmp.lt.s32.totalorder %s27, 0
        %s270 = scalar_select %p269, %s27, 0
        %s271 = smul.addr %s270, 8
        %s272 = scalar_lea.vmem %s1, %s271
        %p273 = scmp.lt.s32.totalorder %s27, 0
        %s274 = scalar_select %p273, %s27, 0
        %s275 = smul.addr %s274, 8
        %s276 = scalar_lea.vmem %s2, %s275
        %v277 = vld [vmem:[%s276] sm:$0xff]
        %v278 = vld [vmem:[%s232] sm:$0xff]
        %v280 = vcombine.high %v278, %v278
        %282 = vrot.lane.b32.xlu0 %v278, 17
        %v283 = vpop.permute.xlu0 %282
        %284 = vrot.lane.b32.xlu0 %v280, 17
        %v285 = vpop.permute.xlu0 %284
        %v286 = vlaneseq
        %v287 = vand.u32 %v286, 127
        %vm288 = vcmp.lt.s32.totalorder %v287, 17
        %v289 = vsel %vm288, %v283, %v285
        %v290 = vsel %vm288, %v285, %v283
        %v291 = vld [vmem:[#allocation5] ss:$8 sm:$0x3]
        %v293 = vlaneseq
        %v294 = vshrl.u32 %v293, 7
        %v295 = vsub.s32 0, %v294
        %v296 = vrot.slane %v291, %v295
        %v297 = vlaneseq
        %v298 = vshrl.u32 %v297, 7
        %v299 = vsub.s32 1, %v298
        %v300 = vrot.slane %v291, %v299
        %v303 = vmul.f32 %v290, %v296
        %v304 = vmul.f32 %v289, %v300
        %305 = vrot.lane.b32.xlu0 %v278, 16
        %v306 = vpop.permute.xlu0 %305
        %307 = vrot.lane.b32.xlu0 %v280, 16
        %v308 = vpop.permute.xlu0 %307
        %vm309 = vcmp.lt.s32.totalorder %v287, 16
        %v310 = vsel %vm309, %v306, %v308
        %v311 = vsel %vm309, %v308, %v306
        %s312 = scalar_lea.vmem [#allocation5], 1
        %v313 = vld [vmem:[%s312] ss:$8 sm:$0x3]
        %v315 = vlaneseq
        %v316 = vshrl.u32 %v315, 7
        %v317 = vsub.s32 0, %v316
        %v318 = vrot.slane %v313, %v317
        %v319 = vlaneseq
        %v320 = vshrl.u32 %v319, 7
        %v321 = vsub.s32 1, %v320
        %v322 = vrot.slane %v313, %v321
        %v325 = vmul.f32 %v311, %v318
        %v326 = vmul.f32 %v310, %v322
        %327 = vrot.lane.b32.xlu0 %v278, 15
        %v328 = vpop.permute.xlu0 %327
        %329 = vrot.lane.b32.xlu0 %v280, 15
        %v330 = vpop.permute.xlu0 %329
        %vm331 = vcmp.lt.s32.totalorder %v287, 15
        %v332 = vsel %vm331, %v328, %v330
        %v333 = vsel %vm331, %v330, %v328
        %s334 = scalar_lea.vmem [#allocation5], 2
        %v335 = vld [vmem:[%s334] ss:$8 sm:$0x3]
        %v337 = vlaneseq
        %v338 = vshrl.u32 %v337, 7
        %v339 = vsub.s32 0, %v338
        %v340 = vrot.slane %v335, %v339
        %v341 = vlaneseq
        %v342 = vshrl.u32 %v341, 7
        %v343 = vsub.s32 1, %v342
        %v344 = vrot.slane %v335, %v343
        %v347 = vmul.f32 %v333, %v340
        %v348 = vmul.f32 %v332, %v344
        %349 = vrot.lane.b32.xlu0 %v278, 1
        %v350 = vpop.permute.xlu0 %349
        %351 = vrot.lane.b32.xlu0 %v280, 1
        %v352 = vpop.permute.xlu0 %351
        %vm353 = vcmp.lt.s32.totalorder %v287, 1
        %v354 = vsel %vm353, %v350, %v352
        %v355 = vsel %vm353, %v352, %v350
        %s356 = scalar_lea.vmem [#allocation5], 3
        %v357 = vld [vmem:[%s356] ss:$8 sm:$0x3]
        %v359 = vlaneseq
        %v360 = vshrl.u32 %v359, 7
        %v361 = vsub.s32 0, %v360
        %v362 = vrot.slane %v357, %v361
        %v363 = vlaneseq
        %v364 = vshrl.u32 %v363, 7
        %v365 = vsub.s32 1, %v364
        %v366 = vrot.slane %v357, %v365
        %v369 = vmul.f32 %v355, %v362
        %v370 = vmul.f32 %v354, %v366
        %371 = vrot.lane.b32.xlu0 %v278, 127
        %v372 = vpop.permute.xlu0 %371
        %373 = vrot.lane.b32.xlu0 %v280, 127
        %v374 = vpop.permute.xlu0 %373
        %vm375 = vcmp.lt.s32.totalorder %v287, 127
        %v376 = vsel %vm375, %v372, %v374
        %v377 = vsel %vm375, %v374, %v372
        %s378 = scalar_lea.vmem [#allocation5], 5
        %v379 = vld [vmem:[%s378] ss:$8 sm:$0x3]
        %v381 = vlaneseq
        %v382 = vshrl.u32 %v381, 7
        %v383 = vsub.s32 0, %v382
        %v384 = vrot.slane %v379, %v383
        %v385 = vlaneseq
        %v386 = vshrl.u32 %v385, 7
        %v387 = vsub.s32 1, %v386
        %v388 = vrot.slane %v379, %v387
        %v391 = vmul.f32 %v376, %v384
        %v392 = vmul.f32 %v377, %v388
        %393 = vrot.lane.b32.xlu0 %v278, 113
        %v394 = vpop.permute.xlu0 %393
        %395 = vrot.lane.b32.xlu0 %v280, 113
        %v396 = vpop.permute.xlu0 %395
        %vm397 = vcmp.lt.s32.totalorder %v287, 113
        %v398 = vsel %vm397, %v394, %v396
        %v399 = vsel %vm397, %v396, %v394
        %s400 = scalar_lea.vmem [#allocation5], 6
        %v401 = vld [vmem:[%s400] ss:$8 sm:$0x3]
        %v403 = vlaneseq
        %v404 = vshrl.u32 %v403, 7
        %v405 = vsub.s32 0, %v404
        %v406 = vrot.slane %v401, %v405
        %v407 = vlaneseq
        %v408 = vshrl.u32 %v407, 7
        %v409 = vsub.s32 1, %v408
        %v410 = vrot.slane %v401, %v409
        %v413 = vmul.f32 %v398, %v406
        %v414 = vmul.f32 %v399, %v410
        %415 = vrot.lane.b32.xlu0 %v278, 112
        %v416 = vpop.permute.xlu0 %415
        %417 = vrot.lane.b32.xlu0 %v280, 112
        %v418 = vpop.permute.xlu0 %417
        %vm419 = vcmp.lt.s32.totalorder %v287, 112
        %v420 = vsel %vm419, %v416, %v418
        %v421 = vsel %vm419, %v418, %v416
        %s422 = scalar_lea.vmem [#allocation5], 7
        %v423 = vld [vmem:[%s422] ss:$8 sm:$0x3]
        %v425 = vlaneseq
        %v426 = vshrl.u32 %v425, 7
        %v427 = vsub.s32 0, %v426
        %v428 = vrot.slane %v423, %v427
        %v429 = vlaneseq
        %v430 = vshrl.u32 %v429, 7
        %v431 = vsub.s32 1, %v430
        %v432 = vrot.slane %v423, %v431
        %v435 = vmul.f32 %v420, %v428
        %v436 = vmul.f32 %v421, %v432
        %437 = vrot.lane.b32.xlu0 %v278, 111
        %v438 = vpop.permute.xlu0 %437
        %439 = vrot.lane.b32.xlu0 %v280, 111
        %v440 = vpop.permute.xlu0 %439
        %vm441 = vcmp.lt.s32.totalorder %v287, 111
        %v442 = vsel %vm441, %v438, %v440
        %v443 = vsel %vm441, %v440, %v438
        %s444 = scalar_lea.vmem [#allocation5], 16
        %v445 = vld [vmem:[%s444] ss:$8 sm:$0x3]
        %v447 = vlaneseq
        %v448 = vshrl.u32 %v447, 7
        %v449 = vsub.s32 0, %v448
        %v450 = vrot.slane %v445, %v449
        %v451 = vlaneseq
        %v452 = vshrl.u32 %v451, 7
        %v453 = vsub.s32 1, %v452
        %v454 = vrot.slane %v445, %v453
        %v457 = vmul.f32 %v442, %v450
        %v458 = vmul.f32 %v443, %v454
        %v461 = vrot.slane %v325, 4
        %v462 = vrot.slane %v326, 4
        %v467 = vrot.slane %v369, 4
        %v468 = vrot.slane %v370, 4
        %v473 = vrot.slane %v391, 4
        %v474 = vrot.slane %v392, 4
        %v479 = vrot.slane %v435, 4
        %v480 = vrot.slane %v436, 4
        %vm483 = vcmask 1043456
        %v484 = vsel %vm483, %v303, %v461
        %v485 = vsel %vm483, %v304, %v462
        %v486 = vsel %vm483, %v347, %v467
        %v487 = vsel %vm483, %v348, %v468
        %v488 = vsel %vm483, %v278, %v473
        %v489 = vsel %vm483, %v280, %v474
        %v490 = vsel %vm483, %v413, %v479
        %v491 = vsel %vm483, %v414, %v480
        %v492 = vld [vmem:[%s272] sm:$0xff]
        %494 = vset.pattern.permute.xlu0 0
        %495 = vperm.xlu0 %494, %v277
        %v496 = vpop.permute.xlu0 %495
        %vm498 = vcmask 293888
        %v500 = vsel %vm498, %v492, 0
        %v503 = vsel %vm483, %v457, 0
        %v506 = vsel %vm483, %v458, 0
        %v508 = vand.u32 %v485, 4294901760
        %509 = vmatprep.subr.mxu0 %v508
        %v510 = vand.u32 %v484, 4294901760
        %511 = vmatpush1.msra.mxu0 %v510
        %v512 = vand.u32 %v487, 4294901760
        %513 = vmatprep.subr.mxu0 %v512
        %v514 = vand.u32 %v486, 4294901760
        %515 = vmatpush1.msra.mxu0 %v514
        %v516 = vand.u32 %v489, 4294901760
        %517 = vmatprep.subr.mxu0 %v516
        %v518 = vand.u32 %v488, 4294901760
        %519 = vmatpush1.msra.mxu0 %v518
        %v520 = vand.u32 %v491, 4294901760
        %521 = vmatprep.subr.mxu0 %v520
        %v522 = vand.u32 %v490, 4294901760
        %523 = vmatpush1.msra.mxu0 %v522
        %v524 = vand.u32 %v506, 4294901760
        %525 = vmatprep.subr.mxu0 %v524
        %v526 = vand.u32 %v503, 4294901760
        %527 = vmatpush1.msra.mxu0 %v526
        %528 = vmatprep.subr.mxu0 0.0
        %529 = vmatpush1.msra.mxu0 0.0
        %530 = vmatprep.subr.mxu0 0.0
        %531 = vmatpush1.msra.mxu0 0.0
        %532 = vmatprep.subr.mxu0 0.0
        %533 = vmatpush1.msra.mxu0 0.0
        %534 = vmatprep.subr.mxu0 0.0
        %535 = vmatpush1.msra.mxu0 0.0
        %536 = vmatprep.subr.mxu0 0.0
        %537 = vmatpush1.msra.mxu0 0.0
        %538 = vmatprep.subr.mxu0 0.0
        %539 = vmatpush1.msra.mxu0 0.0
        %540 = vmatprep.subr.mxu0 0.0
        %541 = vmatpush1.msra.mxu0 0.0
        %542 = vmatprep.subr.mxu0 0.0
        %543 = vmatpush1.msra.mxu0 0.0
        %544 = vmatprep.subr.mxu0 0.0
        %545 = vmatpush1.msra.mxu0 0.0
        %546 = vmatprep.subr.mxu0 0.0
        %547 = vmatpush1.msra.mxu0 0.0
        %548 = vmatprep.subr.mxu0 0.0
        %549 = vmatpush1.msra.mxu0 0.0
        %550 = vmatprep.subr.mxu0 0.0
        %551 = vmatpush1.msra.mxu0 0.0
        %552 = vmatprep.subr.mxu0 0.0
        %553 = vmatpush1.msra.mxu0 0.0
        %554 = vmatprep.subr.mxu0 0.0
        %555 = vmatpush1.msra.mxu0 0.0
        %556 = vmatprep.subr.mxu0 0.0
        %557 = vmatpush1.msra.mxu0 0.0
        %558 = vmatprep.subr.mxu0 0.0
        %559 = vmatpush1.msra.mxu0 0.0
        %560 = vmatprep.subr.mxu0 0.0
        %561 = vmatpush1.msra.mxu0 0.0
        %562 = vmatprep.subr.mxu0 0.0
        %563 = vmatpush1.msra.mxu0 0.0
        %564 = vmatprep.subr.mxu0 0.0
        %565 = vmatpush1.msra.mxu0 0.0
        %566 = vmatprep.subr.mxu0 0.0
        %567 = vmatpush1.msra.mxu0 0.0
        %568 = vmatprep.subr.mxu0 0.0
        %569 = vmatpush1.msra.mxu0 0.0
        %570 = vmatprep.subr.mxu0 0.0
        %571 = vmatpush1.msra.mxu0 0.0
        %572 = vmatprep.subr.mxu0 0.0
        %573 = vmatpush1.msra.mxu0 0.0
        %574 = vmatprep.subr.mxu0 0.0
        %575 = vmatpush1.msra.mxu0 0.0
        %576 = vmatprep.subr.mxu0 0.0
        %577 = vmatpush1.msra.mxu0 0.0
        %578 = vmatprep.subr.mxu0 0.0
        %579 = vmatpush1.msra.mxu0 0.0
        %580 = vmatprep.subr.mxu0 0.0
        %581 = vmatpush1.msra.mxu0 0.0
        %582 = vmatprep.mubr.f32.mxu0 0.0
        %v583 = vand.u32 %v500, 4294901760
        %v584 = vsub.f32 %v500, %v583
        %v585 = vand.u32 %v584, 4294901760
        %v586 = vsub.f32 %v584, %v585
        %v587 = vand.u32 %v586, 4294901760
        %588 = vmatmul.mubr.f32.gmra.mrb[0].mxu0 %v587
        %v589 = vpop.f32.mrb[0].mxu0
        %v590 = vadd.f32 %v496, %v589
        %v591 = vpop.f32.mrb[0].mxu0
        %v592 = vadd.f32 %v496, %v591
        %593 = vdwg.mxu0
        %v594 = vand.u32 %v485, 4294901760
        %v595 = vsub.f32 %v485, %v594
        %v596 = vand.u32 %v595, 4294901760
        %v597 = vsub.f32 %v595, %v596
        %v598 = vand.u32 %v597, 4294901760
        %599 = vmatprep.subr.mxu0 %v598
        %v600 = vand.u32 %v484, 4294901760
        %v601 = vsub.f32 %v484, %v600
        %v602 = vand.u32 %v601, 4294901760
        %v603 = vsub.f32 %v601, %v602
        %v604 = vand.u32 %v603, 4294901760
        %605 = vmatpush1.msra.mxu0 %v604
        %v606 = vand.u32 %v487, 4294901760
        %v607 = vsub.f32 %v487, %v606
        %v608 = vand.u32 %v607, 4294901760
        %v609 = vsub.f32 %v607, %v608
        %v610 = vand.u32 %v609, 4294901760
        %611 = vmatprep.subr.mxu0 %v610
        %v612 = vand.u32 %v486, 4294901760
        %v613 = vsub.f32 %v486, %v612
        %v614 = vand.u32 %v613, 4294901760
        %v615 = vsub.f32 %v613, %v614
        %v616 = vand.u32 %v615, 4294901760
        %617 = vmatpush1.msra.mxu0 %v616
        %v618 = vand.u32 %v489, 4294901760
        %v619 = vsub.f32 %v489, %v618
        %v620 = vand.u32 %v619, 4294901760
        %v621 = vsub.f32 %v619, %v620
        %v622 = vand.u32 %v621, 4294901760
        %623 = vmatprep.subr.mxu0 %v622
        %v624 = vand.u32 %v488, 4294901760
        %v625 = vsub.f32 %v488, %v624
        %v626 = vand.u32 %v625, 4294901760
        %v627 = vsub.f32 %v625, %v626
        %v628 = vand.u32 %v627, 4294901760
        %629 = vmatpush1.msra.mxu0 %v628
        %v630 = vand.u32 %v491, 4294901760
        %v631 = vsub.f32 %v491, %v630
        %v632 = vand.u32 %v631, 4294901760
        %v633 = vsub.f32 %v631, %v632
        %v634 = vand.u32 %v633, 4294901760
        %635 = vmatprep.subr.mxu0 %v634
        %v636 = vand.u32 %v490, 4294901760
        %v637 = vsub.f32 %v490, %v636
        %v638 = vand.u32 %v637, 4294901760
        %v639 = vsub.f32 %v637, %v638
        %v640 = vand.u32 %v639, 4294901760
        %641 = vmatpush1.msra.mxu0 %v640
        %v642 = vand.u32 %v506, 4294901760
        %v643 = vsub.f32 %v506, %v642
        %v644 = vand.u32 %v643, 4294901760
        %v645 = vsub.f32 %v643, %v644
        %v646 = vand.u32 %v645, 4294901760
        %647 = vmatprep.subr.mxu0 %v646
        %v648 = vand.u32 %v503, 4294901760
        %v649 = vsub.f32 %v503, %v648
        %v650 = vand.u32 %v649, 4294901760
        %v651 = vsub.f32 %v649, %v650
        %v652 = vand.u32 %v651, 4294901760
        %653 = vmatpush1.msra.mxu0 %v652
        %654 = vmatprep.subr.mxu0 0.0
        %655 = vmatpush1.msra.mxu0 0.0
        %656 = vmatprep.subr.mxu0 0.0
        %657 = vmatpush1.msra.mxu0 0.0
        %658 = vmatprep.subr.mxu0 0.0
        %659 = vmatpush1.msra.mxu0 0.0
        %660 = vmatprep.subr.mxu0 0.0
        %661 = vmatpush1.msra.mxu0 0.0
        %662 = vmatprep.subr.mxu0 0.0
        %663 = vmatpush1.msra.mxu0 0.0
        %664 = vmatprep.subr.mxu0 0.0
        %665 = vmatpush1.msra.mxu0 0.0
        %666 = vmatprep.subr.mxu0 0.0
        %667 = vmatpush1.msra.mxu0 0.0
        %668 = vmatprep.subr.mxu0 0.0
        %669 = vmatpush1.msra.mxu0 0.0
        %670 = vmatprep.subr.mxu0 0.0
        %671 = vmatpush1.msra.mxu0 0.0
        %672 = vmatprep.subr.mxu0 0.0
        %673 = vmatpush1.msra.mxu0 0.0
        %674 = vmatprep.subr.mxu0 0.0
        %675 = vmatpush1.msra.mxu0 0.0
        %676 = vmatprep.subr.mxu0 0.0
        %677 = vmatpush1.msra.mxu0 0.0
        %678 = vmatprep.subr.mxu0 0.0
        %679 = vmatpush1.msra.mxu0 0.0
        %680 = vmatprep.subr.mxu0 0.0
        %681 = vmatpush1.msra.mxu0 0.0
        %682 = vmatprep.subr.mxu0 0.0
        %683 = vmatpush1.msra.mxu0 0.0
        %684 = vmatprep.subr.mxu0 0.0
        %685 = vmatpush1.msra.mxu0 0.0
        %686 = vmatprep.subr.mxu0 0.0
        %687 = vmatpush1.msra.mxu0 0.0
        %688 = vmatprep.subr.mxu0 0.0
        %689 = vmatpush1.msra.mxu0 0.0
        %690 = vmatprep.subr.mxu0 0.0
        %691 = vmatpush1.msra.mxu0 0.0
        %692 = vmatprep.subr.mxu0 0.0
        %693 = vmatpush1.msra.mxu0 0.0
        %694 = vmatprep.subr.mxu0 0.0
        %695 = vmatpush1.msra.mxu0 0.0
        %696 = vmatprep.subr.mxu0 0.0
        %697 = vmatpush1.msra.mxu0 0.0
        %698 = vmatprep.subr.mxu0 0.0
        %699 = vmatpush1.msra.mxu0 0.0
        %700 = vmatprep.subr.mxu0 0.0
        %701 = vmatpush1.msra.mxu0 0.0
        %702 = vmatprep.subr.mxu0 0.0
        %703 = vmatpush1.msra.mxu0 0.0
        %704 = vmatprep.subr.mxu0 0.0
        %705 = vmatpush1.msra.mxu0 0.0
        %706 = vmatprep.subr.mxu0 0.0
        %707 = vmatpush1.msra.mxu0 0.0
        %708 = vmatprep.mubr.f32.mxu0 0.0
        %v709 = vand.u32 %v500, 4294901760
        %710 = vmatmul.mubr.f32.gmra.mrb[0].mxu0 %v709
        %v711 = vpop.f32.mrb[0].mxu0
        %v712 = vadd.f32 %v590, %v711
        %v713 = vpop.f32.mrb[0].mxu0
        %v714 = vadd.f32 %v592, %v713
        %715 = vdwg.mxu0
        %v716 = vand.u32 %v485, 4294901760
        %v717 = vsub.f32 %v485, %v716
        %718 = vmatprep.subr.mxu0 %v717
        %v719 = vand.u32 %v484, 4294901760
        %v720 = vsub.f32 %v484, %v719
        %721 = vmatpush1.msra.mxu0 %v720
        %v722 = vand.u32 %v487, 4294901760
        %v723 = vsub.f32 %v487, %v722
        %724 = vmatprep.subr.mxu0 %v723
        %v725 = vand.u32 %v486, 4294901760
        %v726 = vsub.f32 %v486, %v725
        %727 = vmatpush1.msra.mxu0 %v726
        %v728 = vand.u32 %v489, 4294901760
        %v729 = vsub.f32 %v489, %v728
        %730 = vmatprep.subr.mxu0 %v729
        %v731 = vand.u32 %v488, 4294901760
        %v732 = vsub.f32 %v488, %v731
        %733 = vmatpush1.msra.mxu0 %v732
        %v734 = vand.u32 %v491, 4294901760
        %v735 = vsub.f32 %v491, %v734
        %736 = vmatprep.subr.mxu0 %v735
        %v737 = vand.u32 %v490, 4294901760
        %v738 = vsub.f32 %v490, %v737
        %739 = vmatpush1.msra.mxu0 %v738
        %v740 = vand.u32 %v506, 4294901760
        %v741 = vsub.f32 %v506, %v740
        %742 = vmatprep.subr.mxu0 %v741
        %v743 = vand.u32 %v503, 4294901760
        %v744 = vsub.f32 %v503, %v743
        %745 = vmatpush1.msra.mxu0 %v744
        %746 = vmatprep.subr.mxu0 0.0
        %747 = vmatpush1.msra.mxu0 0.0
        %748 = vmatprep.subr.mxu0 0.0
        %749 = vmatpush1.msra.mxu0 0.0
        %750 = vmatprep.subr.mxu0 0.0
        %751 = vmatpush1.msra.mxu0 0.0
        %752 = vmatprep.subr.mxu0 0.0
        %753 = vmatpush1.msra.mxu0 0.0
        %754 = vmatprep.subr.mxu0 0.0
        %755 = vmatpush1.msra.mxu0 0.0
        %756 = vmatprep.subr.mxu0 0.0
        %757 = vmatpush1.msra.mxu0 0.0
        %758 = vmatprep.subr.mxu0 0.0
        %759 = vmatpush1.msra.mxu0 0.0
        %760 = vmatprep.subr.mxu0 0.0
        %761 = vmatpush1.msra.mxu0 0.0
        %762 = vmatprep.subr.mxu0 0.0
        %763 = vmatpush1.msra.mxu0 0.0
        %764 = vmatprep.subr.mxu0 0.0
        %765 = vmatpush1.msra.mxu0 0.0
        %766 = vmatprep.subr.mxu0 0.0
        %767 = vmatpush1.msra.mxu0 0.0
        %768 = vmatprep.subr.mxu0 0.0
        %769 = vmatpush1.msra.mxu0 0.0
        %770 = vmatprep.subr.mxu0 0.0
        %771 = vmatpush1.msra.mxu0 0.0
        %772 = vmatprep.subr.mxu0 0.0
        %773 = vmatpush1.msra.mxu0 0.0
        %774 = vmatprep.subr.mxu0 0.0
        %775 = vmatpush1.msra.mxu0 0.0
        %776 = vmatprep.subr.mxu0 0.0
        %777 = vmatpush1.msra.mxu0 0.0
        %778 = vmatprep.subr.mxu0 0.0
        %779 = vmatpush1.msra.mxu0 0.0
        %780 = vmatprep.subr.mxu0 0.0
        %781 = vmatpush1.msra.mxu0 0.0
        %782 = vmatprep.subr.mxu0 0.0
        %783 = vmatpush1.msra.mxu0 0.0
        %784 = vmatprep.subr.mxu0 0.0
        %785 = vmatpush1.msra.mxu0 0.0
        %786 = vmatprep.subr.mxu0 0.0
        %787 = vmatpush1.msra.mxu0 0.0
        %788 = vmatprep.subr.mxu0 0.0
        %789 = vmatpush1.msra.mxu0 0.0
        %790 = vmatprep.subr.mxu0 0.0
        %791 = vmatpush1.msra.mxu0 0.0
        %792 = vmatprep.subr.mxu0 0.0
        %793 = vmatpush1.msra.mxu0 0.0
        %794 = vmatprep.subr.mxu0 0.0
        %795 = vmatpush1.msra.mxu0 0.0
        %796 = vmatprep.subr.mxu0 0.0
        %797 = vmatpush1.msra.mxu0 0.0
        %798 = vmatprep.subr.mxu0 0.0
        %799 = vmatpush1.msra.mxu0 0.0
        %800 = vmatprep.mubr.f32.mxu0 0.0
        %v801 = vand.u32 %v500, 4294901760
        %v802 = vsub.f32 %v500, %v801
        %803 = vmatmul.mubr.f32.gmra.mrb[0].mxu0 %v802
        %v804 = vpop.f32.mrb[0].mxu0
        %v805 = vadd.f32 %v712, %v804
        %v806 = vpop.f32.mrb[0].mxu0
        %v807 = vadd.f32 %v714, %v806
        %808 = vdwg.mxu0
        %v809 = vand.u32 %v485, 4294901760
        %810 = vmatprep.subr.mxu0 %v809
        %v811 = vand.u32 %v484, 4294901760
        %812 = vmatpush1.msra.mxu0 %v811
        %v813 = vand.u32 %v487, 4294901760
        %814 = vmatprep.subr.mxu0 %v813
        %v815 = vand.u32 %v486, 4294901760
        %816 = vmatpush1.msra.mxu0 %v815
        %v817 = vand.u32 %v489, 4294901760
        %818 = vmatprep.subr.mxu0 %v817
        %v819 = vand.u32 %v488, 4294901760
        %820 = vmatpush1.msra.mxu0 %v819
        %v821 = vand.u32 %v491, 4294901760
        %822 = vmatprep.subr.mxu0 %v821
        %v823 = vand.u32 %v490, 4294901760
        %824 = vmatpush1.msra.mxu0 %v823
        %v825 = vand.u32 %v506, 4294901760
        %826 = vmatprep.subr.mxu0 %v825
        %v827 = vand.u32 %v503, 4294901760
        %828 = vmatpush1.msra.mxu0 %v827
        %829 = vmatprep.subr.mxu0 0.0
        %830 = vmatpush1.msra.mxu0 0.0
        %831 = vmatprep.subr.mxu0 0.0
        %832 = vmatpush1.msra.mxu0 0.0
        %833 = vmatprep.subr.mxu0 0.0
        %834 = vmatpush1.msra.mxu0 0.0
        %835 = vmatprep.subr.mxu0 0.0
        %836 = vmatpush1.msra.mxu0 0.0
        %837 = vmatprep.subr.mxu0 0.0
        %838 = vmatpush1.msra.mxu0 0.0
        %839 = vmatprep.subr.mxu0 0.0
        %840 = vmatpush1.msra.mxu0 0.0
        %841 = vmatprep.subr.mxu0 0.0
        %842 = vmatpush1.msra.mxu0 0.0
        %843 = vmatprep.subr.mxu0 0.0
        %844 = vmatpush1.msra.mxu0 0.0
        %845 = vmatprep.subr.mxu0 0.0
        %846 = vmatpush1.msra.mxu0 0.0
        %847 = vmatprep.subr.mxu0 0.0
        %848 = vmatpush1.msra.mxu0 0.0
        %849 = vmatprep.subr.mxu0 0.0
        %850 = vmatpush1.msra.mxu0 0.0
        %851 = vmatprep.subr.mxu0 0.0
        %852 = vmatpush1.msra.mxu0 0.0
        %853 = vmatprep.subr.mxu0 0.0
        %854 = vmatpush1.msra.mxu0 0.0
        %855 = vmatprep.subr.mxu0 0.0
        %856 = vmatpush1.msra.mxu0 0.0
        %857 = vmatprep.subr.mxu0 0.0
        %858 = vmatpush1.msra.mxu0 0.0
        %859 = vmatprep.subr.mxu0 0.0
        %860 = vmatpush1.msra.mxu0 0.0
        %861 = vmatprep.subr.mxu0 0.0
        %862 = vmatpush1.msra.mxu0 0.0
        %863 = vmatprep.subr.mxu0 0.0
        %864 = vmatpush1.msra.mxu0 0.0
        %865 = vmatprep.subr.mxu0 0.0
        %866 = vmatpush1.msra.mxu0 0.0
        %867 = vmatprep.subr.mxu0 0.0
        %868 = vmatpush1.msra.mxu0 0.0
        %869 = vmatprep.subr.mxu0 0.0
        %870 = vmatpush1.msra.mxu0 0.0
        %871 = vmatprep.subr.mxu0 0.0
        %872 = vmatpush1.msra.mxu0 0.0
        %873 = vmatprep.subr.mxu0 0.0
        %874 = vmatpush1.msra.mxu0 0.0
        %875 = vmatprep.subr.mxu0 0.0
        %876 = vmatpush1.msra.mxu0 0.0
        %877 = vmatprep.subr.mxu0 0.0
        %878 = vmatpush1.msra.mxu0 0.0
        %879 = vmatprep.subr.mxu0 0.0
        %880 = vmatpush1.msra.mxu0 0.0
        %881 = vmatprep.subr.mxu0 0.0
        %882 = vmatpush1.msra.mxu0 0.0
        %883 = vmatprep.mubr.f32.mxu0 0.0
        %v884 = vand.u32 %v500, 4294901760
        %v885 = vsub.f32 %v500, %v884
        %v886 = vand.u32 %v885, 4294901760
        %887 = vmatmul.mubr.f32.gmra.mrb[0].mxu0 %v886
        %v888 = vpop.f32.mrb[0].mxu0
        %v889 = vadd.f32 %v805, %v888
        %v890 = vpop.f32.mrb[0].mxu0
        %v891 = vadd.f32 %v807, %v890
        %892 = vdwg.mxu0
        %v893 = vand.u32 %v485, 4294901760
        %v894 = vsub.f32 %v485, %v893
        %v895 = vand.u32 %v894, 4294901760
        %896 = vmatprep.subr.mxu0 %v895
        %v897 = vand.u32 %v484, 4294901760
        %v898 = vsub.f32 %v484, %v897
        %v899 = vand.u32 %v898, 4294901760
        %900 = vmatpush1.msra.mxu0 %v899
        %v901 = vand.u32 %v487, 4294901760
        %v902 = vsub.f32 %v487, %v901
        %v903 = vand.u32 %v902, 4294901760
        %904 = vmatprep.subr.mxu0 %v903
        %v905 = vand.u32 %v486, 4294901760
        %v906 = vsub.f32 %v486, %v905
        %v907 = vand.u32 %v906, 4294901760
        %908 = vmatpush1.msra.mxu0 %v907
        %v909 = vand.u32 %v489, 4294901760
        %v910 = vsub.f32 %v489, %v909
        %v911 = vand.u32 %v910, 4294901760
        %912 = vmatprep.subr.mxu0 %v911
        %v913 = vand.u32 %v488, 4294901760
        %v914 = vsub.f32 %v488, %v913
        %v915 = vand.u32 %v914, 4294901760
        %916 = vmatpush1.msra.mxu0 %v915
        %v917 = vand.u32 %v491, 4294901760
        %v918 = vsub.f32 %v491, %v917
        %v919 = vand.u32 %v918, 4294901760
        %920 = vmatprep.subr.mxu0 %v919
        %v921 = vand.u32 %v490, 4294901760
        %v922 = vsub.f32 %v490, %v921
        %v923 = vand.u32 %v922, 4294901760
        %924 = vmatpush1.msra.mxu0 %v923
        %v925 = vand.u32 %v506, 4294901760
        %v926 = vsub.f32 %v506, %v925
        %v927 = vand.u32 %v926, 4294901760
        %928 = vmatprep.subr.mxu0 %v927
        %v929 = vand.u32 %v503, 4294901760
        %v930 = vsub.f32 %v503, %v929
        %v931 = vand.u32 %v930, 4294901760
        %932 = vmatpush1.msra.mxu0 %v931
        %933 = vmatprep.subr.mxu0 0.0
        %934 = vmatpush1.msra.mxu0 0.0
        %935 = vmatprep.subr.mxu0 0.0
        %936 = vmatpush1.msra.mxu0 0.0
        %937 = vmatprep.subr.mxu0 0.0
        %938 = vmatpush1.msra.mxu0 0.0
        %939 = vmatprep.subr.mxu0 0.0
        %940 = vmatpush1.msra.mxu0 0.0
        %941 = vmatprep.subr.mxu0 0.0
        %942 = vmatpush1.msra.mxu0 0.0
        %943 = vmatprep.subr.mxu0 0.0
        %944 = vmatpush1.msra.mxu0 0.0
        %945 = vmatprep.subr.mxu0 0.0
        %946 = vmatpush1.msra.mxu0 0.0
        %947 = vmatprep.subr.mxu0 0.0
        %948 = vmatpush1.msra.mxu0 0.0
        %949 = vmatprep.subr.mxu0 0.0
        %950 = vmatpush1.msra.mxu0 0.0
        %951 = vmatprep.subr.mxu0 0.0
        %952 = vmatpush1.msra.mxu0 0.0
        %953 = vmatprep.subr.mxu0 0.0
        %954 = vmatpush1.msra.mxu0 0.0
        %955 = vmatprep.subr.mxu0 0.0
        %956 = vmatpush1.msra.mxu0 0.0
        %957 = vmatprep.subr.mxu0 0.0
        %958 = vmatpush1.msra.mxu0 0.0
        %959 = vmatprep.subr.mxu0 0.0
        %960 = vmatpush1.msra.mxu0 0.0
        %961 = vmatprep.subr.mxu0 0.0
        %962 = vmatpush1.msra.mxu0 0.0
        %963 = vmatprep.subr.mxu0 0.0
        %964 = vmatpush1.msra.mxu0 0.0
        %965 = vmatprep.subr.mxu0 0.0
        %966 = vmatpush1.msra.mxu0 0.0
        %967 = vmatprep.subr.mxu0 0.0
        %968 = vmatpush1.msra.mxu0 0.0
        %969 = vmatprep.subr.mxu0 0.0
        %970 = vmatpush1.msra.mxu0 0.0
        %971 = vmatprep.subr.mxu0 0.0
        %972 = vmatpush1.msra.mxu0 0.0
        %973 = vmatprep.subr.mxu0 0.0
        %974 = vmatpush1.msra.mxu0 0.0
        %975 = vmatprep.subr.mxu0 0.0
        %976 = vmatpush1.msra.mxu0 0.0
        %977 = vmatprep.subr.mxu0 0.0
        %978 = vmatpush1.msra.mxu0 0.0
        %979 = vmatprep.subr.mxu0 0.0
        %980 = vmatpush1.msra.mxu0 0.0
        %981 = vmatprep.subr.mxu0 0.0
        %982 = vmatpush1.msra.mxu0 0.0
        %983 = vmatprep.subr.mxu0 0.0
        %984 = vmatpush1.msra.mxu0 0.0
        %985 = vmatprep.subr.mxu0 0.0
        %986 = vmatpush1.msra.mxu0 0.0
        %987 = vmatprep.mubr.f32.mxu0 0.0
        %v988 = vand.u32 %v500, 4294901760
        %989 = vmatmul.mubr.f32.gmra.mrb[0].mxu0 %v988
        %v990 = vpop.f32.mrb[0].mxu0
        %v991 = vadd.f32 %v889, %v990
        %v992 = vpop.f32.mrb[0].mxu0
        %v993 = vadd.f32 %v891, %v992
        %994 = vdwg.mxu0
        %v995 = vand.u32 %v485, 4294901760
        %996 = vmatprep.subr.mxu0 %v995
        %v997 = vand.u32 %v484, 4294901760
        %998 = vmatpush1.msra.mxu0 %v997
        %v999 = vand.u32 %v487, 4294901760
        %1000 = vmatprep.subr.mxu0 %v999
        %v1001 = vand.u32 %v486, 4294901760
        %1002 = vmatpush1.msra.mxu0 %v1001
        %v1003 = vand.u32 %v489, 4294901760
        %1004 = vmatprep.subr.mxu0 %v1003
        %v1005 = vand.u32 %v488, 4294901760
        %1006 = vmatpush1.msra.mxu0 %v1005
        %v1007 = vand.u32 %v491, 4294901760
        %1008 = vmatprep.subr.mxu0 %v1007
        %v1009 = vand.u32 %v490, 4294901760
        %1010 = vmatpush1.msra.mxu0 %v1009
        %v1011 = vand.u32 %v506, 4294901760
        %1012 = vmatprep.subr.mxu0 %v1011
        %v1013 = vand.u32 %v503, 4294901760
        %1014 = vmatpush1.msra.mxu0 %v1013
        %1015 = vmatprep.subr.mxu0 0.0
        %1016 = vmatpush1.msra.mxu0 0.0
        %1017 = vmatprep.subr.mxu0 0.0
        %1018 = vmatpush1.msra.mxu0 0.0
        %1019 = vmatprep.subr.mxu0 0.0
        %1020 = vmatpush1.msra.mxu0 0.0
        %1021 = vmatprep.subr.mxu0 0.0
        %1022 = vmatpush1.msra.mxu0 0.0
        %1023 = vmatprep.subr.mxu0 0.0
        %1024 = vmatpush1.msra.mxu0 0.0
        %1025 = vmatprep.subr.mxu0 0.0
        %1026 = vmatpush1.msra.mxu0 0.0
        %1027 = vmatprep.subr.mxu0 0.0
        %1028 = vmatpush1.msra.mxu0 0.0
        %1029 = vmatprep.subr.mxu0 0.0
        %1030 = vmatpush1.msra.mxu0 0.0
        %1031 = vmatprep.subr.mxu0 0.0
        %1032 = vmatpush1.msra.mxu0 0.0
        %1033 = vmatprep.subr.mxu0 0.0
        %1034 = vmatpush1.msra.mxu0 0.0
        %1035 = vmatprep.subr.mxu0 0.0
        %1036 = vmatpush1.msra.mxu0 0.0
        %1037 = vmatprep.subr.mxu0 0.0
        %1038 = vmatpush1.msra.mxu0 0.0
        %1039 = vmatprep.subr.mxu0 0.0
        %1040 = vmatpush1.msra.mxu0 0.0
        %1041 = vmatprep.subr.mxu0 0.0
        %1042 = vmatpush1.msra.mxu0 0.0
        %1043 = vmatprep.subr.mxu0 0.0
        %1044 = vmatpush1.msra.mxu0 0.0
        %1045 = vmatprep.subr.mxu0 0.0
        %1046 = vmatpush1.msra.mxu0 0.0
        %1047 = vmatprep.subr.mxu0 0.0
        %1048 = vmatpush1.msra.mxu0 0.0
        %1049 = vmatprep.subr.mxu0 0.0
        %1050 = vmatpush1.msra.mxu0 0.0
        %1051 = vmatprep.subr.mxu0 0.0
        %1052 = vmatpush1.msra.mxu0 0.0
        %1053 = vmatprep.subr.mxu0 0.0
        %1054 = vmatpush1.msra.mxu0 0.0
        %1055 = vmatprep.subr.mxu0 0.0
        %1056 = vmatpush1.msra.mxu0 0.0
        %1057 = vmatprep.subr.mxu0 0.0
        %1058 = vmatpush1.msra.mxu0 0.0
        %1059 = vmatprep.subr.mxu0 0.0
        %1060 = vmatpush1.msra.mxu0 0.0
        %1061 = vmatprep.subr.mxu0 0.0
        %1062 = vmatpush1.msra.mxu0 0.0
        %1063 = vmatprep.subr.mxu0 0.0
        %1064 = vmatpush1.msra.mxu0 0.0
        %1065 = vmatprep.subr.mxu0 0.0
        %1066 = vmatpush1.msra.mxu0 0.0
        %1067 = vmatprep.subr.mxu0 0.0
        %1068 = vmatpush1.msra.mxu0 0.0
        %1069 = vmatprep.mubr.f32.mxu0 0.0
        %v1070 = vand.u32 %v500, 4294901760
        %1071 = vmatmul.mubr.f32.gmra.mrb[0].mxu0 %v1070
        %v1072 = vpop.f32.mrb[0].mxu0
        %v1073 = vadd.f32 %v991, %v1072
        %v1074 = vpop.f32.mrb[0].mxu0
        %v1075 = vadd.f32 %v993, %v1074
        %1076 = vdwg.mxu0
        %v1077 = vmax.f32 %v1073, 0.0
        %v1078 = vmax.f32 %v1075, 0.0
        %1079 = vst [vmem:[%s268] sm:$0xff] %v1077
        %1080 = vst [vmem:[%s268 + $0x8] sm:$0xff] %v1078
        %s1081 = sand.u32 %s143, 1
        %s1082 = scalar_lea.sflag [#allocation4], %s1081
        %s1083 = sand.u32 %s143, 1
        %s1084 = smul.addr %s1083, 16
        %s1085 = scalar_lea.vmem [#allocation7], %s1084
        // Predicated region
        $region45: #{tpu_custom_call.1} parent=35 // pred_check
          %p1086 = pneg %p153
        $region46: #{tpu_custom_call.1} parent=35 // pred_check_branch
          %1088 = sbr.rel (%p1086) target = $region48
        $region47: #{tpu_custom_call.1} parent=35 // pred_region
          %s1090 = ssub.s32 256, 256
          %1091 = vsyncadd %s1082, %s1090
          %s1092 = smul.addr %s27, 2
          %s1093 = smul.addr %s26, 2
          %s1094 = sadd.s32 %s1092, %s1093
          %s1095 = smul.addr %s1094, 128
          %s1096 = scalar_lea.hbm %s4, %s1095
          %s1098 = sshll.u32 %s1085, 4
          %s1099 = int_to_ptr.vmem [resolvable:$true] %s1098
          %1101 = dma.vmem_to_hbm [thread:$0]  %s1099, 256, %s1096, %s1082
        $region48: #{tpu_custom_call.1} parent=35 // pred_fallthru
          _
      $region36: #{tpu_custom_call.1} parent=5 // pred_fallthru
        _
      %p1102 = scmp.le.s32.totalorder 2, %s17
      // Predicated region
      $region49: #{tpu_custom_call.1} parent=5 // pred_check
        %p1103 = pneg %p1102
      $region50: #{tpu_custom_call.1} parent=5 // pred_check_branch
        %1105 = sbr.rel (%p1103) target = $region52
      $region51: #{tpu_custom_call.1} parent=5 // pred_region
        %s1106 = ssub.s32 %s17, 2
        // Predicated region
        $region53: #{tpu_custom_call.1} parent=51 // pred_check
          %p1107 = pneg %p159
        $region54: #{tpu_custom_call.1} parent=51 // pred_check_branch
          %1109 = sbr.rel (%p1107) target = $region56
        $region55: #{tpu_custom_call.1} parent=51 // pred_region
          %s1110 = sand.u32 %s144, 1
          %s1111 = scalar_lea.sflag [#allocation4], %s1110
          %s1112 = sand.u32 %s144, 1
          %s1113 = smul.addr %s1112, 16
          %s1114 = scalar_lea.vmem [#allocation7], %s1113
          %1115 = dma.done %s1111, 256
        $region56: #{tpu_custom_call.1} parent=51 // pred_fallthru
          _
      $region52: #{tpu_custom_call.1} parent=5 // pred_fallthru
        _
    $region6: #{tpu_custom_call.1} parent=1 // loop_footer
      %s21 = sadd.s32 1, %s17
    $region7: #{tpu_custom_call.1} parent=1 // loop_footer_branch
      %16 = sbr.rel target = $region3
    $region8: #{tpu_custom_call.1} parent=1 // loop_exit
      _
    %1116 = vsyncpa [#allocation3], 1
    %s1117 = scalar_lea.sflag [#allocation3], 1
    %1118 = vsyncpa %s1117, 1
    %1119 = vsyncpa [#allocation6], 1
    %1120 = vsyncpa [#allocation4], 1
    %s1121 = scalar_lea.sflag [#allocation4], 1
    %1122 = vsyncpa %s1121, 1

</llo_original>
